<compile_context>
chip_gen: v7x
topology: tpu7x:2x2x1
jax: 0.10.0
libtpu: 0.0.40
codegen_flags: <defaults>
</compile_context>

<pallas_src>
import functools

import numpy as np

import jax
import jax.numpy as jnp
from jax.experimental import pallas as pl
from jax.experimental.pallas import tpu as pltpu

EPS = 1e-5


def basic_block_kernel(x_ref, w1_ref, w2_ref, mask_ref, p_ref, out_ref, *,
                       width, mxu_dtype):
    """x_ref:    (Cp, N*H*W)   channels on sublanes, batch+space merged on lanes
       w*_ref:   (Cp, 9*Cp)    packed conv taps, column index t*Cp + cin, t = dy*3+dx
       mask_ref: (9*Cp, N*H*W) {0,1} validity of each tap at each output position
       p_ref:    (Cp, 4)       columns [gamma1, beta1, gamma2, beta2]
       out_ref:  (Cp, N*H*W)"""
    cp, nhw = x_ref.shape
    inv_cnt = 1.0 / nhw
    shifts = [(dy - 1) * width + (dx - 1) for dy in range(3) for dx in range(3)]

    def conv3x3(a, w_ref_):
        # im2col: 9 lane-rotated copies of `a` stacked on 8-aligned sublane
        # groups; every out-of-image (and roll-wrapped / cross-batch) position
        # is zeroed by a single mask multiply; then one MXU matmul, K = 9*Cp.
        patch = jnp.concatenate(
            [a if s == 0 else pltpu.roll(a, shift=(-s) % nhw, axis=1)
             for s in shifts], axis=0)
        patch = patch * mask_ref[...]
        return jnp.dot(w_ref_[...].astype(mxu_dtype), patch.astype(mxu_dtype),
                       preferred_element_type=jnp.float32)

    def batchnorm(y, col):
        # Training-mode BN over (N, H, W) == the lane axis; two-pass variance.
        mean = jnp.sum(y, axis=1, keepdims=True) * inv_cnt            # (Cp, 1)
        d = y - mean
        var = jnp.sum(d * d, axis=1, keepdims=True) * inv_cnt
        scale = p_ref[:, col:col + 1] * jax.lax.rsqrt(var + EPS)      # (Cp, 1)
        shift = p_ref[:, col + 1:col + 2] - mean * scale
        return y * scale + shift                         # implicit lane splat

    identity = x_ref[...]
    y = conv3x3(identity, w1_ref)
    y = jnp.maximum(batchnorm(y, 0), 0.0)
    y = conv3x3(y, w2_ref)
    y = batchnorm(y, 2)
    # residual (stride=1, downsample=None -> identity = x) + ReLU
    out_ref[...] = jnp.maximum(y + identity, 0.0)


def _round_up(v, m):
    return (v + m - 1) // m * m


def _pack_conv_weight(w_hwio, cp):
    """HWIO (3,3,Cin,Cout) -> (Cp, 9*Cp); column index t*Cp + cin, t = dy*3+dx,
    zero-padded in both channel dims so sublane tiles are 8-aligned."""
    kh, kw, cin, cout = w_hwio.shape
    w_t = jnp.transpose(w_hwio.reshape(kh * kw, cin, cout), (2, 0, 1))  # (Cout,9,Cin)
    w_p = jnp.zeros((cp, kh * kw, cp), jnp.float32).at[:cout, :, :cin].set(
        w_t.astype(jnp.float32))
    return w_p.reshape(cp, kh * kw * cp)


def _tap_mask(height, width, cp, n):
    """(9*cp, n*H*W) {0,1}: tap t is valid at output position p iff the shifted
    source pixel lies inside the image (also kills roll wrap-around and
    cross-batch bleed). Compile-time constant."""
    hh, ww = np.meshgrid(np.arange(height), np.arange(width), indexing="ij")
    rows = []
    for dy in range(3):
        for dx in range(3):
            oy, ox = dy - 1, dx - 1
            valid = ((hh + oy >= 0) & (hh + oy < height) &
                     (ww + ox >= 0) & (ww + ox < width)).reshape(-1)
            rows.append(np.broadcast_to(valid, (cp, height * width)))
    m = np.concatenate(rows, axis=0).astype(np.float32)       # (9*cp, H*W)
    return jnp.asarray(np.tile(m, (1, n)))                    # (9*cp, n*H*W)


@jax.jit
def basic_block(x_nchw, w1, w2, g1, b1, g2, b2):
    """BasicBlock forward. x_nchw: (N,C,H,W) f32; w*: HWIO (3,3,Cin,Cout)."""
    N, C, H, W = x_nchw.shape
    Cout = w1.shape[-1]
    assert Cout == C, "identity path requires inplanes == planes (stride=1)"
    HW, Cp = H * W, _round_up(C, 8)

    # Channels on sublanes (zero-padded to a native 8-row tile); batch and
    # space merged on the lane axis (column index = n*HW + h*W + w).
    x2 = jnp.transpose(x_nchw, (1, 0, 2, 3)).reshape(C, N * HW)
    x2 = jnp.pad(x2.astype(jnp.float32), ((0, Cp - C), (0, 0)))

    params = jnp.zeros((Cp, 4), jnp.float32).at[:C].set(
        jnp.stack([g1, b1, g2, b2], axis=1).astype(jnp.float32))

    # bf16 MXU operands only when the contraction is deep enough to matter;
    # keeps the strict f32 reference tolerance at demo size.
    mxu_dtype = jnp.bfloat16 if 9 * Cp >= 128 else jnp.float32

    vmem = pl.BlockSpec(memory_space=pltpu.MemorySpace.VMEM)
    kernel = functools.partial(basic_block_kernel, width=W, mxu_dtype=mxu_dtype)
    out2 = pl.pallas_call(
        kernel,
        out_shape=jax.ShapeDtypeStruct((Cp, N * HW), jnp.float32),
        in_specs=[vmem] * 5,
        out_specs=vmem,
    )(x2, _pack_conv_weight(w1, Cp), _pack_conv_weight(w2, Cp),
      _tap_mask(H, W, Cp, N), params)

    return jnp.transpose(out2[:C].reshape(C, N, H, W), (1, 0, 2, 3))


def basic_block_reference(x, w1, w2, g1, b1, g2, b2):
    """Pure-JAX reference (matches PyTorch BasicBlock with training-mode BN)."""
    def conv3x3(x, w):  # x NCHW, w HWIO
        return jax.lax.conv_general_dilated(
            x, w, window_strides=(1, 1), padding=((1, 1), (1, 1)),
            dimension_numbers=("NCHW", "HWIO", "NCHW"))

    def bn(y, g, b):
        mean = jnp.mean(y, axis=(0, 2, 3), keepdims=True)
        var = jnp.mean((y - mean) ** 2, axis=(0, 2, 3), keepdims=True)
        return ((y - mean) * jax.lax.rsqrt(var + EPS)
                * g.reshape(1, -1, 1, 1) + b.reshape(1, -1, 1, 1))

    out = jnp.maximum(bn(conv3x3(x, w1), g1, b1), 0.0)
    out = bn(conv3x3(out, w2), g2, b2)
    return jnp.maximum(out + x, 0.0)


if __name__ == "__main__":
    # Small shapes: inplanes = planes = 4, stride = 1, downsample = None.
    N, C, H, W = 2, 4, 16, 16

    key = jax.random.PRNGKey(0)
    kx, kw1, kw2 = jax.random.split(key, 3)

    x = jax.random.normal(kx, (N, C, H, W), jnp.float32)
    # conv weights in HWIO layout: (3, 3, Cin, Cout)
    w1 = 0.2 * jax.random.normal(kw1, (3, 3, C, C), jnp.float32)
    w2 = 0.2 * jax.random.normal(kw2, (3, 3, C, C), jnp.float32)
    # deterministic, non-trivial BN affine parameters
    g1 = 1.0 + 0.10 * jnp.arange(C, dtype=jnp.float32)
    b1 = -0.05 + 0.02 * jnp.arange(C, dtype=jnp.float32)
    g2 = 0.9 + 0.05 * jnp.arange(C, dtype=jnp.float32)
    b2 = 0.03 * jnp.arange(C, dtype=jnp.float32)

    out = basic_block(x, w1, w2, g1, b1, g2, b2)
    out = jax.block_until_ready(out)

    ref = basic_block_reference(x, w1, w2, g1, b1, g2, b2)
    assert out.shape == (N, C, H, W)
    # exercises first/last rows & columns -> validates the roll+mask boundary
    # handling end to end.
    assert jnp.allclose(out, ref, atol=1e-4, rtol=1e-4), (
        f"max abs err {jnp.max(jnp.abs(out - ref))}")

    print("KERNEL_OK")
</pallas_src>

<mosaic_0001>
module attributes {stable_mosaic.version = 11 : i64} {
  func.func @basic_block_kernel(%arg0: memref<8x512xf32, #tpu.memory_space<vmem>>, %arg1: memref<8x72xf32, #tpu.memory_space<vmem>>, %arg2: memref<8x72xf32, #tpu.memory_space<vmem>>, %arg3: memref<72x512xf32, #tpu.memory_space<vmem>>, %arg4: memref<8x4xf32, #tpu.memory_space<vmem>>, %arg5: memref<8x512xf32, #tpu.memory_space<vmem>>) attributes {dimension_semantics = [], scalar_prefetch = 0 : i64, scratch_operands = 0 : i64, tpu.core_type = #tpu.core_type<tc>} {
    %c0 = arith.constant 0 : index
    %c0_0 = arith.constant 0 : index
    %0 = vector.load %arg0[%c0, %c0_0] : memref<8x512xf32, #tpu.memory_space<vmem>>, vector<8x512xf32>
    %c17_i32 = arith.constant 17 : i32
    %1 = tpu.dynamic_rotate %0 by %c17_i32 dim 1 : vector<8x512xf32>, i32 -> vector<8x512xf32>
    %c16_i32 = arith.constant 16 : i32
    %2 = tpu.dynamic_rotate %0 by %c16_i32 dim 1 : vector<8x512xf32>, i32 -> vector<8x512xf32>
    %c15_i32 = arith.constant 15 : i32
    %3 = tpu.dynamic_rotate %0 by %c15_i32 dim 1 : vector<8x512xf32>, i32 -> vector<8x512xf32>
    %c1_i32 = arith.constant 1 : i32
    %4 = tpu.dynamic_rotate %0 by %c1_i32 dim 1 : vector<8x512xf32>, i32 -> vector<8x512xf32>
    %c511_i32 = arith.constant 511 : i32
    %5 = tpu.dynamic_rotate %0 by %c511_i32 dim 1 : vector<8x512xf32>, i32 -> vector<8x512xf32>
    %c497_i32 = arith.constant 497 : i32
    %6 = tpu.dynamic_rotate %0 by %c497_i32 dim 1 : vector<8x512xf32>, i32 -> vector<8x512xf32>
    %c496_i32 = arith.constant 496 : i32
    %7 = tpu.dynamic_rotate %0 by %c496_i32 dim 1 : vector<8x512xf32>, i32 -> vector<8x512xf32>
    %c495_i32 = arith.constant 495 : i32
    %8 = tpu.dynamic_rotate %0 by %c495_i32 dim 1 : vector<8x512xf32>, i32 -> vector<8x512xf32>
    %9 = tpu.concatenate %1, %2, %3, %4, %0, %5, %6, %7, %8 in 0 : vector<8x512xf32>, vector<8x512xf32>, vector<8x512xf32>, vector<8x512xf32>, vector<8x512xf32>, vector<8x512xf32>, vector<8x512xf32>, vector<8x512xf32>, vector<8x512xf32> -> vector<72x512xf32>
    %c0_1 = arith.constant 0 : index
    %c0_2 = arith.constant 0 : index
    %10 = vector.load %arg3[%c0_1, %c0_2] : memref<72x512xf32, #tpu.memory_space<vmem>>, vector<72x512xf32>
    %11 = arith.mulf %9, %10 : vector<72x512xf32>
    %c0_3 = arith.constant 0 : index
    %c0_4 = arith.constant 0 : index
    %12 = vector.load %arg1[%c0_3, %c0_4] : memref<8x72xf32, #tpu.memory_space<vmem>>, vector<8x72xf32>
    %cst = arith.constant dense<0.000000e+00> : vector<8x512xf32>
    %13 = tpu.matmul %12, %11, %cst {dimension_numbers = #tpu.dot_dimension_numbers<[1], [0], [0], [1], [0, 0, 1, 1], [], []>} : vector<8x72xf32>, vector<72x512xf32>, vector<8x512xf32> -> vector<8x512xf32>
    %cst_5 = arith.constant dense<0.000000e+00> : vector<8xf32>
    %14 = vector.multi_reduction <add>, %13, %cst_5 [1] : vector<8x512xf32> to vector<8xf32>
    %15 = vector.shape_cast %14 : vector<8xf32> to vector<8x1xf32>
    %cst_6 = arith.constant 0.001953125 : f32
    %16 = vector.broadcast %cst_6 : f32 to vector<8x1xf32>
    %17 = arith.mulf %15, %16 : vector<8x1xf32>
    %18 = vector.broadcast %17 : vector<8x1xf32> to vector<8x512xf32>
    %19 = arith.subf %13, %18 : vector<8x512xf32>
    %20 = arith.mulf %19, %19 : vector<8x512xf32>
    %cst_7 = arith.constant dense<0.000000e+00> : vector<8xf32>
    %21 = vector.multi_reduction <add>, %20, %cst_7 [1] : vector<8x512xf32> to vector<8xf32>
    %22 = vector.shape_cast %21 : vector<8xf32> to vector<8x1xf32>
    %cst_8 = arith.constant 0.001953125 : f32
    %23 = vector.broadcast %cst_8 : f32 to vector<8x1xf32>
    %24 = arith.mulf %22, %23 : vector<8x1xf32>
    %c0_9 = arith.constant 0 : index
    %c0_10 = arith.constant 0 : index
    %25 = vector.load %arg4[%c0_9, %c0_10] : memref<8x4xf32, #tpu.memory_space<vmem>>, vector<8x1xf32>
    %cst_11 = arith.constant 9.99999974E-6 : f32
    %26 = vector.broadcast %cst_11 : f32 to vector<8x1xf32>
    %27 = arith.addf %24, %26 : vector<8x1xf32>
    %28 = math.rsqrt %27 : vector<8x1xf32>
    %29 = arith.mulf %25, %28 : vector<8x1xf32>
    %c0_12 = arith.constant 0 : index
    %c1 = arith.constant 1 : index
    %30 = vector.load %arg4[%c0_12, %c1] : memref<8x4xf32, #tpu.memory_space<vmem>>, vector<8x1xf32>
    %31 = arith.mulf %17, %29 : vector<8x1xf32>
    %32 = arith.subf %30, %31 : vector<8x1xf32>
    %33 = vector.broadcast %29 : vector<8x1xf32> to vector<8x512xf32>
    %34 = arith.mulf %13, %33 : vector<8x512xf32>
    %35 = vector.broadcast %32 : vector<8x1xf32> to vector<8x512xf32>
    %36 = arith.addf %34, %35 : vector<8x512xf32>
    %cst_13 = arith.constant 0.000000e+00 : f32
    %37 = vector.broadcast %cst_13 : f32 to vector<8x512xf32>
    %38 = arith.maximumf %36, %37 : vector<8x512xf32>
    %c17_i32_14 = arith.constant 17 : i32
    %39 = tpu.dynamic_rotate %38 by %c17_i32_14 dim 1 : vector<8x512xf32>, i32 -> vector<8x512xf32>
    %c16_i32_15 = arith.constant 16 : i32
    %40 = tpu.dynamic_rotate %38 by %c16_i32_15 dim 1 : vector<8x512xf32>, i32 -> vector<8x512xf32>
    %c15_i32_16 = arith.constant 15 : i32
    %41 = tpu.dynamic_rotate %38 by %c15_i32_16 dim 1 : vector<8x512xf32>, i32 -> vector<8x512xf32>
    %c1_i32_17 = arith.constant 1 : i32
    %42 = tpu.dynamic_rotate %38 by %c1_i32_17 dim 1 : vector<8x512xf32>, i32 -> vector<8x512xf32>
    %c511_i32_18 = arith.constant 511 : i32
    %43 = tpu.dynamic_rotate %38 by %c511_i32_18 dim 1 : vector<8x512xf32>, i32 -> vector<8x512xf32>
    %c497_i32_19 = arith.constant 497 : i32
    %44 = tpu.dynamic_rotate %38 by %c497_i32_19 dim 1 : vector<8x512xf32>, i32 -> vector<8x512xf32>
    %c496_i32_20 = arith.constant 496 : i32
    %45 = tpu.dynamic_rotate %38 by %c496_i32_20 dim 1 : vector<8x512xf32>, i32 -> vector<8x512xf32>
    %c495_i32_21 = arith.constant 495 : i32
    %46 = tpu.dynamic_rotate %38 by %c495_i32_21 dim 1 : vector<8x512xf32>, i32 -> vector<8x512xf32>
    %47 = tpu.concatenate %39, %40, %41, %42, %38, %43, %44, %45, %46 in 0 : vector<8x512xf32>, vector<8x512xf32>, vector<8x512xf32>, vector<8x512xf32>, vector<8x512xf32>, vector<8x512xf32>, vector<8x512xf32>, vector<8x512xf32>, vector<8x512xf32> -> vector<72x512xf32>
    %c0_22 = arith.constant 0 : index
    %c0_23 = arith.constant 0 : index
    %48 = vector.load %arg3[%c0_22, %c0_23] : memref<72x512xf32, #tpu.memory_space<vmem>>, vector<72x512xf32>
    %49 = arith.mulf %47, %48 : vector<72x512xf32>
    %c0_24 = arith.constant 0 : index
    %c0_25 = arith.constant 0 : index
    %50 = vector.load %arg2[%c0_24, %c0_25] : memref<8x72xf32, #tpu.memory_space<vmem>>, vector<8x72xf32>
    %cst_26 = arith.constant dense<0.000000e+00> : vector<8x512xf32>
    %51 = tpu.matmul %50, %49, %cst_26 {dimension_numbers = #tpu.dot_dimension_numbers<[1], [0], [0], [1], [0, 0, 1, 1], [], []>} : vector<8x72xf32>, vector<72x512xf32>, vector<8x512xf32> -> vector<8x512xf32>
    %cst_27 = arith.constant dense<0.000000e+00> : vector<8xf32>
    %52 = vector.multi_reduction <add>, %51, %cst_27 [1] : vector<8x512xf32> to vector<8xf32>
    %53 = vector.shape_cast %52 : vector<8xf32> to vector<8x1xf32>
    %cst_28 = arith.constant 0.001953125 : f32
    %54 = vector.broadcast %cst_28 : f32 to vector<8x1xf32>
    %55 = arith.mulf %53, %54 : vector<8x1xf32>
    %56 = vector.broadcast %55 : vector<8x1xf32> to vector<8x512xf32>
    %57 = arith.subf %51, %56 : vector<8x512xf32>
    %58 = arith.mulf %57, %57 : vector<8x512xf32>
    %cst_29 = arith.constant dense<0.000000e+00> : vector<8xf32>
    %59 = vector.multi_reduction <add>, %58, %cst_29 [1] : vector<8x512xf32> to vector<8xf32>
    %60 = vector.shape_cast %59 : vector<8xf32> to vector<8x1xf32>
    %cst_30 = arith.constant 0.001953125 : f32
    %61 = vector.broadcast %cst_30 : f32 to vector<8x1xf32>
    %62 = arith.mulf %60, %61 : vector<8x1xf32>
    %c0_31 = arith.constant 0 : index
    %c2 = arith.constant 2 : index
    %63 = vector.load %arg4[%c0_31, %c2] : memref<8x4xf32, #tpu.memory_space<vmem>>, vector<8x1xf32>
    %cst_32 = arith.constant 9.99999974E-6 : f32
    %64 = vector.broadcast %cst_32 : f32 to vector<8x1xf32>
    %65 = arith.addf %62, %64 : vector<8x1xf32>
    %66 = math.rsqrt %65 : vector<8x1xf32>
    %67 = arith.mulf %63, %66 : vector<8x1xf32>
    %c0_33 = arith.constant 0 : index
    %c3 = arith.constant 3 : index
    %68 = vector.load %arg4[%c0_33, %c3] : memref<8x4xf32, #tpu.memory_space<vmem>>, vector<8x1xf32>
    %69 = arith.mulf %55, %67 : vector<8x1xf32>
    %70 = arith.subf %68, %69 : vector<8x1xf32>
    %71 = vector.broadcast %67 : vector<8x1xf32> to vector<8x512xf32>
    %72 = arith.mulf %51, %71 : vector<8x512xf32>
    %73 = vector.broadcast %70 : vector<8x1xf32> to vector<8x512xf32>
    %74 = arith.addf %72, %73 : vector<8x512xf32>
    %75 = arith.addf %74, %0 : vector<8x512xf32>
    %cst_34 = arith.constant 0.000000e+00 : f32
    %76 = vector.broadcast %cst_34 : f32 to vector<8x512xf32>
    %77 = arith.maximumf %75, %76 : vector<8x512xf32>
    %c0_35 = arith.constant 0 : index
    %c0_36 = arith.constant 0 : index
    %78 = vector.load %arg5[%c0_35, %c0_36] : memref<8x512xf32, #tpu.memory_space<vmem>>, vector<8x512xf32>
    tpu.vector_store %arg5[%c0_35, %c0_36], %77 {strides = array<i32>} : memref<8x512xf32, #tpu.memory_space<vmem>>, vector<8x512xf32>,
    return
  }
}

</mosaic_0001>

<llo_original>
// kernel: basic_block.1
$region0: #{basic_block.1}
  #allocation0 [shape = 'u32[]', space=smem, size = 0x4, offset = 0x4, fixed_abs, tag = 'smem constant byte address 0x4 - core index']
  #allocation1 [shape = 'u32[144,128]{1,0:T(1,128)}', space=vmem, size = 0x12000, scoped, tag = 'internal scratch']
  %s0 = inlined_call_operand.vmem [shape: f32[8,512], index: 0, kind: input, shape index: {}]
  %s1 = inlined_call_operand.vmem [shape: f32[8,72], index: 1, kind: input, shape index: {}]
  %s2 = inlined_call_operand.vmem [shape: f32[8,72], index: 2, kind: input, shape index: {}]
  %s3 = inlined_call_operand.vmem [shape: f32[72,512], index: 3, kind: input, shape index: {}]
  %s4 = inlined_call_operand.vmem [shape: f32[8,4], index: 4, kind: input, shape index: {}]
  %s5 = inlined_call_operand.vmem [shape: f32[8,512], index: 5, kind: output, shape index: {}]
  %s6 = sld [smem:[#allocation0]]
  $region30: #{basic_block.1} parent=0
    _
  %s8 = ssub.s32 1, %s6
  %s9 = scalar_select 0, %s8, %s6
  // Predicated region
  $region2: #{basic_block.1} parent=0 // pred_check
    _
  $region3: #{basic_block.1} parent=0 // pred_check_branch
    %11 = sbr.rel (0) target = $region5
  $region4: #{basic_block.1} parent=0 // pred_region
    _
  $region5: #{basic_block.1} parent=0 // pred_fallthru
    _
  // Predicated region
  $region6: #{basic_block.1} parent=0 // pred_check
    _
  $region7: #{basic_block.1} parent=0 // pred_check_branch
    %13 = sbr.rel (0) target = $region9
  $region8: #{basic_block.1} parent=0 // pred_region
    _
  $region9: #{basic_block.1} parent=0 // pred_fallthru
    _
  // Predicated region
  $region10: #{basic_block.1} parent=0 // pred_check
    _
  $region11: #{basic_block.1} parent=0 // pred_check_branch
    %15 = sbr.rel (0) target = $region13
  $region12: #{basic_block.1} parent=0 // pred_region
    _
  $region13: #{basic_block.1} parent=0 // pred_fallthru
    _
  // Predicated region
  $region14: #{basic_block.1} parent=0 // pred_check
    _
  $region15: #{basic_block.1} parent=0 // pred_check_branch
    %17 = sbr.rel (0) target = $region17
  $region16: #{basic_block.1} parent=0 // pred_region
    _
  $region17: #{basic_block.1} parent=0 // pred_fallthru
    _
  // Predicated region
  $region18: #{basic_block.1} parent=0 // pred_check
    _
  $region19: #{basic_block.1} parent=0 // pred_check_branch
    %19 = sbr.rel (0) target = $region21
  $region20: #{basic_block.1} parent=0 // pred_region
    _
  $region21: #{basic_block.1} parent=0 // pred_fallthru
    _
  %v20 = vld [vmem:[%s0] sm:$0xff]
  %v21 = vld [vmem:[%s0 + $0x8] sm:$0xff]
  %v22 = vld [vmem:[%s0 + $0x10] sm:$0xff]
  %v23 = vld [vmem:[%s0 + $0x18] sm:$0xff]
  %24 = vrot.lane.b32.xlu0 %v20, 17
  %v25 = vpop.permute.xlu0 %24
  %26 = vrot.lane.b32.xlu0 %v21, 17
  %v27 = vpop.permute.xlu0 %26
  %28 = vrot.lane.b32.xlu0 %v22, 17
  %v29 = vpop.permute.xlu0 %28
  %30 = vrot.lane.b32.xlu0 %v23, 17
  %v31 = vpop.permute.xlu0 %30
  %v32 = vlaneseq
  %v33 = vand.u32 %v32, 127
  %vm34 = vcmp.lt.s32.totalorder %v33, 17
  %v35 = vsel %vm34, %v29, %v31
  %v36 = vsel %vm34, %v27, %v29
  %v37 = vsel %vm34, %v25, %v27
  %v38 = vsel %vm34, %v31, %v25
  %39 = vrot.lane.b32.xlu0 %v20, 16
  %v40 = vpop.permute.xlu0 %39
  %41 = vrot.lane.b32.xlu0 %v21, 16
  %v42 = vpop.permute.xlu0 %41
  %43 = vrot.lane.b32.xlu0 %v22, 16
  %v44 = vpop.permute.xlu0 %43
  %45 = vrot.lane.b32.xlu0 %v23, 16
  %v46 = vpop.permute.xlu0 %45
  %vm47 = vcmp.lt.s32.totalorder %v33, 16
  %v48 = vsel %vm47, %v44, %v46
  %v49 = vsel %vm47, %v42, %v44
  %v50 = vsel %vm47, %v40, %v42
  %v51 = vsel %vm47, %v46, %v40
  %52 = vrot.lane.b32.xlu0 %v20, 15
  %v53 = vpop.permute.xlu0 %52
  %54 = vrot.lane.b32.xlu0 %v21, 15
  %v55 = vpop.permute.xlu0 %54
  %56 = vrot.lane.b32.xlu0 %v22, 15
  %v57 = vpop.permute.xlu0 %56
  %58 = vrot.lane.b32.xlu0 %v23, 15
  %v59 = vpop.permute.xlu0 %58
  %vm60 = vcmp.lt.s32.totalorder %v33, 15
  %v61 = vsel %vm60, %v57, %v59
  %v62 = vsel %vm60, %v55, %v57
  %v63 = vsel %vm60, %v53, %v55
  %v64 = vsel %vm60, %v59, %v53
  %65 = vrot.lane.b32.xlu0 %v20, 1
  %v66 = vpop.permute.xlu0 %65
  %67 = vrot.lane.b32.xlu0 %v21, 1
  %v68 = vpop.permute.xlu0 %67
  %69 = vrot.lane.b32.xlu0 %v22, 1
  %v70 = vpop.permute.xlu0 %69
  %71 = vrot.lane.b32.xlu0 %v23, 1
  %v72 = vpop.permute.xlu0 %71
  %vm73 = vcmp.lt.s32.totalorder %v33, 1
  %v74 = vsel %vm73, %v70, %v72
  %v75 = vsel %vm73, %v68, %v70
  %v76 = vsel %vm73, %v66, %v68
  %v77 = vsel %vm73, %v72, %v66
  %78 = vrot.lane.b32.xlu0 %v20, 127
  %v79 = vpop.permute.xlu0 %78
  %80 = vrot.lane.b32.xlu0 %v21, 127
  %v81 = vpop.permute.xlu0 %80
  %82 = vrot.lane.b32.xlu0 %v22, 127
  %v83 = vpop.permute.xlu0 %82
  %84 = vrot.lane.b32.xlu0 %v23, 127
  %v85 = vpop.permute.xlu0 %84
  %vm86 = vcmp.lt.s32.totalorder %v33, 127
  %v87 = vsel %vm86, %v83, %v85
  %v88 = vsel %vm86, %v81, %v83
  %v89 = vsel %vm86, %v79, %v81
  %v90 = vsel %vm86, %v85, %v79
  %91 = vrot.lane.b32.xlu0 %v20, 113
  %v92 = vpop.permute.xlu0 %91
  %93 = vrot.lane.b32.xlu0 %v21, 113
  %v94 = vpop.permute.xlu0 %93
  %95 = vrot.lane.b32.xlu0 %v22, 113
  %v96 = vpop.permute.xlu0 %95
  %97 = vrot.lane.b32.xlu0 %v23, 113
  %v98 = vpop.permute.xlu0 %97
  %vm99 = vcmp.lt.s32.totalorder %v33, 113
  %v100 = vsel %vm99, %v96, %v98
  %v101 = vsel %vm99, %v94, %v96
  %v102 = vsel %vm99, %v92, %v94
  %v103 = vsel %vm99, %v98, %v92
  %104 = vrot.lane.b32.xlu0 %v20, 112
  %v105 = vpop.permute.xlu0 %104
  %106 = vrot.lane.b32.xlu0 %v21, 112
  %v107 = vpop.permute.xlu0 %106
  %108 = vrot.lane.b32.xlu0 %v22, 112
  %v109 = vpop.permute.xlu0 %108
  %110 = vrot.lane.b32.xlu0 %v23, 112
  %v111 = vpop.permute.xlu0 %110
  %vm112 = vcmp.lt.s32.totalorder %v33, 112
  %v113 = vsel %vm112, %v109, %v111
  %v114 = vsel %vm112, %v107, %v109
  %v115 = vsel %vm112, %v105, %v107
  %v116 = vsel %vm112, %v111, %v105
  %117 = vrot.lane.b32.xlu0 %v20, 111
  %v118 = vpop.permute.xlu0 %117
  %119 = vrot.lane.b32.xlu0 %v21, 111
  %v120 = vpop.permute.xlu0 %119
  %121 = vrot.lane.b32.xlu0 %v22, 111
  %v122 = vpop.permute.xlu0 %121
  %123 = vrot.lane.b32.xlu0 %v23, 111
  %v124 = vpop.permute.xlu0 %123
  %vm125 = vcmp.lt.s32.totalorder %v33, 111
  %v126 = vsel %vm125, %v122, %v124
  %v127 = vsel %vm125, %v120, %v122
  %v128 = vsel %vm125, %v118, %v120
  %v129 = vsel %vm125, %v124, %v118
  %v130 = vld [vmem:[%s3] sm:$0xff]
  %v131 = vld [vmem:[%s3 + $0x8] sm:$0xff]
  %v132 = vld [vmem:[%s3 + $0x10] sm:$0xff]
  %v133 = vld [vmem:[%s3 + $0x18] sm:$0xff]
  %v134 = vld [vmem:[%s3 + $0x20] sm:$0xff]
  %v135 = vld [vmem:[%s3 + $0x28] sm:$0xff]
  %v136 = vld [vmem:[%s3 + $0x30] sm:$0xff]
  %v137 = vld [vmem:[%s3 + $0x38] sm:$0xff]
  %v138 = vld [vmem:[%s3 + $0x40] sm:$0xff]
  %v139 = vld [vmem:[%s3 + $0x48] sm:$0xff]
  %v140 = vld [vmem:[%s3 + $0x50] sm:$0xff]
  %v141 = vld [vmem:[%s3 + $0x58] sm:$0xff]
  %v142 = vld [vmem:[%s3 + $0x60] sm:$0xff]
  %v143 = vld [vmem:[%s3 + $0x68] sm:$0xff]
  %v144 = vld [vmem:[%s3 + $0x70] sm:$0xff]
  %v145 = vld [vmem:[%s3 + $0x78] sm:$0xff]
  %v146 = vld [vmem:[%s3 + $0x80] sm:$0xff]
  %v147 = vld [vmem:[%s3 + $0x88] sm:$0xff]
  %v148 = vld [vmem:[%s3 + $0x90] sm:$0xff]
  %v149 = vld [vmem:[%s3 + $0x98] sm:$0xff]
  %v150 = vld [vmem:[%s3 + $0xa0] sm:$0xff]
  %v151 = vld [vmem:[%s3 + $0xa8] sm:$0xff]
  %v152 = vld [vmem:[%s3 + $0xb0] sm:$0xff]
  %v153 = vld [vmem:[%s3 + $0xb8] sm:$0xff]
  %v154 = vld [vmem:[%s3 + $0xc0] sm:$0xff]
  %v155 = vld [vmem:[%s3 + $0xc8] sm:$0xff]
  %v156 = vld [vmem:[%s3 + $0xd0] sm:$0xff]
  %v157 = vld [vmem:[%s3 + $0xd8] sm:$0xff]
  %v158 = vld [vmem:[%s3 + $0xe0] sm:$0xff]
  %v159 = vld [vmem:[%s3 + $0xe8] sm:$0xff]
  %v160 = vld [vmem:[%s3 + $0xf0] sm:$0xff]
  %v161 = vld [vmem:[%s3 + $0xf8] sm:$0xff]
  %v162 = vld [vmem:[%s3 + $0x100] sm:$0xff]
  %v163 = vld [vmem:[%s3 + $0x108] sm:$0xff]
  %v164 = vld [vmem:[%s3 + $0x110] sm:$0xff]
  %v165 = vld [vmem:[%s3 + $0x118] sm:$0xff]
  %v166 = vmul.f32 %v38, %v130
  %v167 = vmul.f32 %v37, %v131
  %v168 = vmul.f32 %v36, %v132
  %v169 = vmul.f32 %v35, %v133
  %v170 = vmul.f32 %v51, %v134
  %v171 = vmul.f32 %v50, %v135
  %v172 = vmul.f32 %v49, %v136
  %v173 = vmul.f32 %v48, %v137
  %v174 = vmul.f32 %v64, %v138
  %v175 = vmul.f32 %v63, %v139
  %v176 = vmul.f32 %v62, %v140
  %v177 = vmul.f32 %v61, %v141
  %v178 = vmul.f32 %v77, %v142
  %v179 = vmul.f32 %v76, %v143
  %v180 = vmul.f32 %v75, %v144
  %v181 = vmul.f32 %v74, %v145
  %v182 = vmul.f32 %v20, %v146
  %v183 = vmul.f32 %v21, %v147
  %v184 = vmul.f32 %v22, %v148
  %v185 = vmul.f32 %v23, %v149
  %v186 = vmul.f32 %v89, %v150
  %v187 = vmul.f32 %v88, %v151
  %v188 = vmul.f32 %v87, %v152
  %v189 = vmul.f32 %v90, %v153
  %v190 = vmul.f32 %v102, %v154
  %v191 = vmul.f32 %v101, %v155
  %v192 = vmul.f32 %v100, %v156
  %v193 = vmul.f32 %v103, %v157
  %v194 = vmul.f32 %v115, %v158
  %v195 = vmul.f32 %v114, %v159
  %v196 = vmul.f32 %v113, %v160
  %v197 = vmul.f32 %v116, %v161
  %v198 = vmul.f32 %v128, %v162
  %v199 = vmul.f32 %v127, %v163
  %v200 = vmul.f32 %v126, %v164
  %v201 = vmul.f32 %v129, %v165
  %v202 = vld [vmem:[%s1] sm:$0xff]
  %vm203 = vcmask 588800
  %v205 = vsel %vm203, %v202, 0
  %207 = vmatprep.subr.mxu0 %v167
  %208 = vmatpush1.msra.mxu0 %v166
  %209 = vmatprep.subr.mxu0 %v171
  %210 = vmatpush1.msra.mxu0 %v170
  %211 = vmatprep.subr.mxu0 %v175
  %212 = vmatpush1.msra.mxu0 %v174
  %213 = vmatprep.subr.mxu0 %v179
  %214 = vmatpush1.msra.mxu0 %v178
  %215 = vmatprep.subr.mxu0 %v183
  %216 = vmatpush1.msra.mxu0 %v182
  %217 = vmatprep.subr.mxu0 %v187
  %218 = vmatpush1.msra.mxu0 %v186
  %219 = vmatprep.subr.mxu0 %v191
  %220 = vmatpush1.msra.mxu0 %v190
  %221 = vmatprep.subr.mxu0 %v195
  %222 = vmatpush1.msra.mxu0 %v194
  %223 = vmatprep.subr.mxu0 %v199
  %224 = vmatpush1.msra.mxu0 %v198
  %225 = vmatprep.subr.mxu0 0.0
  %226 = vmatpush1.msra.mxu0 0.0
  %227 = vmatprep.subr.mxu0 0.0
  %228 = vmatpush1.msra.mxu0 0.0
  %229 = vmatprep.subr.mxu0 0.0
  %230 = vmatpush1.msra.mxu0 0.0
  %231 = vmatprep.subr.mxu0 0.0
  %232 = vmatpush1.msra.mxu0 0.0
  %233 = vmatprep.subr.mxu0 0.0
  %234 = vmatpush1.msra.mxu0 0.0
  %235 = vmatprep.subr.mxu0 0.0
  %236 = vmatpush1.msra.mxu0 0.0
  %237 = vmatprep.subr.mxu0 0.0
  %238 = vmatpush1.msra.mxu0 0.0
  %239 = vmatprep.subr.mxu0 0.0
  %240 = vmatpush1.msra.mxu0 0.0
  %241 = vmatprep.subr.mxu0 0.0
  %242 = vmatpush1.msra.mxu0 0.0
  %243 = vmatprep.subr.mxu0 0.0
  %244 = vmatpush1.msra.mxu0 0.0
  %245 = vmatprep.subr.mxu0 0.0
  %246 = vmatpush1.msra.mxu0 0.0
  %247 = vmatprep.subr.mxu0 0.0
  %248 = vmatpush1.msra.mxu0 0.0
  %249 = vmatprep.subr.mxu0 0.0
  %250 = vmatpush1.msra.mxu0 0.0
  %251 = vmatprep.subr.mxu0 0.0
  %252 = vmatpush1.msra.mxu0 0.0
  %253 = vmatprep.subr.mxu0 0.0
  %254 = vmatpush1.msra.mxu0 0.0
  %255 = vmatprep.subr.mxu0 0.0
  %256 = vmatpush1.msra.mxu0 0.0
  %257 = vmatprep.subr.mxu0 0.0
  %258 = vmatpush1.msra.mxu0 0.0
  %259 = vmatprep.subr.mxu0 0.0
  %260 = vmatpush1.msra.mxu0 0.0
  %261 = vmatprep.subr.mxu0 0.0
  %262 = vmatpush1.msra.mxu0 0.0
  %263 = vmatprep.subr.mxu0 0.0
  %264 = vmatpush1.msra.mxu0 0.0
  %265 = vmatprep.subr.mxu0 0.0
  %266 = vmatpush1.msra.mxu0 0.0
  %267 = vmatprep.subr.mxu0 0.0
  %268 = vmatpush1.msra.mxu0 0.0
  %269 = vmatprep.subr.mxu0 0.0
  %270 = vmatpush1.msra.mxu0 0.0
  %271 = vmatprep.mubr.f32.mxu0 0.0
  %272 = vmatmul.mubr.f32.gmra.mrb[0].mxu0 %v205
  %v273 = vpop.f32.mrb[0].mxu0
  %v274 = vadd.f32 0.0, %v273
  %v275 = vpop.f32.mrb[0].mxu0
  %v276 = vadd.f32 0.0, %v275
  %277 = vdwg.mxu0
  %278 = vmatprep.subr.mxu0 %v169
  %279 = vmatpush1.msra.mxu0 %v168
  %280 = vmatprep.subr.mxu0 %v173
  %281 = vmatpush1.msra.mxu0 %v172
  %282 = vmatprep.subr.mxu0 %v177
  %283 = vmatpush1.msra.mxu0 %v176
  %284 = vmatprep.subr.mxu0 %v181
  %285 = vmatpush1.msra.mxu0 %v180
  %286 = vmatprep.subr.mxu0 %v185
  %287 = vmatpush1.msra.mxu0 %v184
  %288 = vmatprep.subr.mxu0 %v189
  %289 = vmatpush1.msra.mxu0 %v188
  %290 = vmatprep.subr.mxu0 %v193
  %291 = vmatpush1.msra.mxu0 %v192
  %292 = vmatprep.subr.mxu0 %v197
  %293 = vmatpush1.msra.mxu0 %v196
  %294 = vmatprep.subr.mxu0 %v201
  %295 = vmatpush1.msra.mxu0 %v200
  %296 = vmatprep.subr.mxu0 0.0
  %297 = vmatpush1.msra.mxu0 0.0
  %298 = vmatprep.subr.mxu0 0.0
  %299 = vmatpush1.msra.mxu0 0.0
  %300 = vmatprep.subr.mxu0 0.0
  %301 = vmatpush1.msra.mxu0 0.0
  %302 = vmatprep.subr.mxu0 0.0
  %303 = vmatpush1.msra.mxu0 0.0
  %304 = vmatprep.subr.mxu0 0.0
  %305 = vmatpush1.msra.mxu0 0.0
  %306 = vmatprep.subr.mxu0 0.0
  %307 = vmatpush1.msra.mxu0 0.0
  %308 = vmatprep.subr.mxu0 0.0
  %309 = vmatpush1.msra.mxu0 0.0
  %310 = vmatprep.subr.mxu0 0.0
  %311 = vmatpush1.msra.mxu0 0.0
  %312 = vmatprep.subr.mxu0 0.0
  %313 = vmatpush1.msra.mxu0 0.0
  %314 = vmatprep.subr.mxu0 0.0
  %315 = vmatpush1.msra.mxu0 0.0
  %316 = vmatprep.subr.mxu0 0.0
  %317 = vmatpush1.msra.mxu0 0.0
  %318 = vmatprep.subr.mxu0 0.0
  %319 = vmatpush1.msra.mxu0 0.0
  %320 = vmatprep.subr.mxu0 0.0
  %321 = vmatpush1.msra.mxu0 0.0
  %322 = vmatprep.subr.mxu0 0.0
  %323 = vmatpush1.msra.mxu0 0.0
  %324 = vmatprep.subr.mxu0 0.0
  %325 = vmatpush1.msra.mxu0 0.0
  %326 = vmatprep.subr.mxu0 0.0
  %327 = vmatpush1.msra.mxu0 0.0
  %328 = vmatprep.subr.mxu0 0.0
  %329 = vmatpush1.msra.mxu0 0.0
  %330 = vmatprep.subr.mxu0 0.0
  %331 = vmatpush1.msra.mxu0 0.0
  %332 = vmatprep.subr.mxu0 0.0
  %333 = vmatpush1.msra.mxu0 0.0
  %334 = vmatprep.subr.mxu0 0.0
  %335 = vmatpush1.msra.mxu0 0.0
  %336 = vmatprep.subr.mxu0 0.0
  %337 = vmatpush1.msra.mxu0 0.0
  %338 = vmatprep.subr.mxu0 0.0
  %339 = vmatpush1.msra.mxu0 0.0
  %340 = vmatprep.subr.mxu0 0.0
  %341 = vmatpush1.msra.mxu0 0.0
  %342 = vmatprep.mubr.f32.mxu0 0.0
  %343 = vmatmul.mubr.f32.gmra.mrb[0].mxu0 %v205
  %v344 = vpop.f32.mrb[0].mxu0
  %v345 = vadd.f32 0.0, %v344
  %v346 = vpop.f32.mrb[0].mxu0
  %v347 = vadd.f32 0.0, %v346
  %348 = vdwg.mxu0
  %v349 = vadd.f32 %v274, %v276
  %v350 = vadd.f32 %v349, %v345
  %v351 = vadd.f32 %v350, %v347
  %352 = vadd.xlane.f32.xlu0 %v351
  %v353 = vpop.xlane.xlu0 %352
  %v354 = vmul.f32 %v353, 0.001953125
  %v355 = vsub.f32 %v274, %v354
  %v356 = vsub.f32 %v276, %v354
  %v357 = vsub.f32 %v345, %v354
  %v358 = vsub.f32 %v347, %v354
  %v359 = vmul.f32 %v355, %v355
  %v360 = vmul.f32 %v356, %v356
  %v361 = vmul.f32 %v357, %v357
  %v362 = vmul.f32 %v358, %v358
  %v363 = vadd.f32 %v359, %v360
  %v364 = vadd.f32 %v363, %v361
  %v365 = vadd.f32 %v364, %v362
  %366 = vadd.xlane.f32.xlu0 %v365
  %v367 = vpop.xlane.xlu0 %366
  %v368 = vmul.f32 %v367, 0.001953125
  %v369 = vld [vmem:[%s4] sm:$0xff]
  %v370 = vadd.f32 %v368, 1e-05
  %v371 = vrsqrt.pop %v370
  %v372 = vmul.f32 %v369, %v371
  %v373 = vmul.f32 %v354, %v372
  %375 = vrot.lane.b32.xlu0 %v373, 1
  %v376 = vpop.permute.xlu0 %375
  %v378 = vsub.f32 %v369, %v376
  %380 = vset.pattern.permute.xlu0 0
  %381 = vperm.xlu0 %380, %v372
  %v382 = vpop.permute.xlu0 %381
  %v384 = vmul.f32 %v274, %v382
  %v385 = vmul.f32 %v276, %v382
  %v386 = vmul.f32 %v345, %v382
  %v387 = vmul.f32 %v347, %v382
  %389 = vset.pattern.permute.xlu0 1
  %390 = vperm.xlu0 %389, %v378
  %v391 = vpop.permute.xlu0 %390
  %v393 = vadd.f32 %v384, %v391
  %v394 = vadd.f32 %v385, %v391
  %v395 = vadd.f32 %v386, %v391
  %v396 = vadd.f32 %v387, %v391
  %v397 = vmax.f32 %v393, 0.0
  %v398 = vmax.f32 %v394, 0.0
  %v399 = vmax.f32 %v395, 0.0
  %v400 = vmax.f32 %v396, 0.0
  %401 = vrot.lane.b32.xlu0 %v397, 17
  %v402 = vpop.permute.xlu0 %401
  %403 = vrot.lane.b32.xlu0 %v398, 17
  %v404 = vpop.permute.xlu0 %403
  %405 = vrot.lane.b32.xlu0 %v399, 17
  %v406 = vpop.permute.xlu0 %405
  %407 = vrot.lane.b32.xlu0 %v400, 17
  %v408 = vpop.permute.xlu0 %407
  %v409 = vsel %vm34, %v406, %v408
  %v410 = vsel %vm34, %v404, %v406
  %v411 = vsel %vm34, %v402, %v404
  %v412 = vsel %vm34, %v408, %v402
  %413 = vrot.lane.b32.xlu0 %v397, 16
  %v414 = vpop.permute.xlu0 %413
  %415 = vrot.lane.b32.xlu0 %v398, 16
  %v416 = vpop.permute.xlu0 %415
  %417 = vrot.lane.b32.xlu0 %v399, 16
  %v418 = vpop.permute.xlu0 %417
  %419 = vrot.lane.b32.xlu0 %v400, 16
  %v420 = vpop.permute.xlu0 %419
  %v421 = vsel %vm47, %v418, %v420
  %v422 = vsel %vm47, %v416, %v418
  %v423 = vsel %vm47, %v414, %v416
  %v424 = vsel %vm47, %v420, %v414
  %425 = vrot.lane.b32.xlu0 %v397, 15
  %v426 = vpop.permute.xlu0 %425
  %427 = vrot.lane.b32.xlu0 %v398, 15
  %v428 = vpop.permute.xlu0 %427
  %429 = vrot.lane.b32.xlu0 %v399, 15
  %v430 = vpop.permute.xlu0 %429
  %431 = vrot.lane.b32.xlu0 %v400, 15
  %v432 = vpop.permute.xlu0 %431
  %v433 = vsel %vm60, %v430, %v432
  %v434 = vsel %vm60, %v428, %v430
  %v435 = vsel %vm60, %v426, %v428
  %v436 = vsel %vm60, %v432, %v426
  %437 = vrot.lane.b32.xlu0 %v397, 1
  %v438 = vpop.permute.xlu0 %437
  %439 = vrot.lane.b32.xlu0 %v398, 1
  %v440 = vpop.permute.xlu0 %439
  %441 = vrot.lane.b32.xlu0 %v399, 1
  %v442 = vpop.permute.xlu0 %441
  %443 = vrot.lane.b32.xlu0 %v400, 1
  %v444 = vpop.permute.xlu0 %443
  %v445 = vsel %vm73, %v442, %v444
  %v446 = vsel %vm73, %v440, %v442
  %v447 = vsel %vm73, %v438, %v440
  %v448 = vsel %vm73, %v444, %v438
  %449 = vrot.lane.b32.xlu0 %v397, 127
  %v450 = vpop.permute.xlu0 %449
  %451 = vrot.lane.b32.xlu0 %v398, 127
  %v452 = vpop.permute.xlu0 %451
  %453 = vrot.lane.b32.xlu0 %v399, 127
  %v454 = vpop.permute.xlu0 %453
  %455 = vrot.lane.b32.xlu0 %v400, 127
  %v456 = vpop.permute.xlu0 %455
  %v457 = vsel %vm86, %v454, %v456
  %v458 = vsel %vm86, %v452, %v454
  %v459 = vsel %vm86, %v450, %v452
  %v460 = vsel %vm86, %v456, %v450
  %461 = vrot.lane.b32.xlu0 %v397, 113
  %v462 = vpop.permute.xlu0 %461
  %463 = vrot.lane.b32.xlu0 %v398, 113
  %v464 = vpop.permute.xlu0 %463
  %465 = vrot.lane.b32.xlu0 %v399, 113
  %v466 = vpop.permute.xlu0 %465
  %467 = vrot.lane.b32.xlu0 %v400, 113
  %v468 = vpop.permute.xlu0 %467
  %v469 = vsel %vm99, %v466, %v468
  %v470 = vsel %vm99, %v464, %v466
  %v471 = vsel %vm99, %v462, %v464
  %v472 = vsel %vm99, %v468, %v462
  %473 = vrot.lane.b32.xlu0 %v397, 112
  %v474 = vpop.permute.xlu0 %473
  %475 = vrot.lane.b32.xlu0 %v398, 112
  %v476 = vpop.permute.xlu0 %475
  %477 = vrot.lane.b32.xlu0 %v399, 112
  %v478 = vpop.permute.xlu0 %477
  %479 = vrot.lane.b32.xlu0 %v400, 112
  %v480 = vpop.permute.xlu0 %479
  %v481 = vsel %vm112, %v478, %v480
  %v482 = vsel %vm112, %v476, %v478
  %v483 = vsel %vm112, %v474, %v476
  %v484 = vsel %vm112, %v480, %v474
  %485 = vrot.lane.b32.xlu0 %v397, 111
  %v486 = vpop.permute.xlu0 %485
  %487 = vrot.lane.b32.xlu0 %v398, 111
  %v488 = vpop.permute.xlu0 %487
  %489 = vrot.lane.b32.xlu0 %v399, 111
  %v490 = vpop.permute.xlu0 %489
  %491 = vrot.lane.b32.xlu0 %v400, 111
  %v492 = vpop.permute.xlu0 %491
  %v493 = vsel %vm125, %v490, %v492
  %v494 = vsel %vm125, %v488, %v490
  %v495 = vsel %vm125, %v486, %v488
  %v496 = vsel %vm125, %v492, %v486
  %v497 = vmul.f32 %v412, %v130
  %v498 = vmul.f32 %v411, %v131
  %v499 = vmul.f32 %v410, %v132
  %v500 = vmul.f32 %v409, %v133
  %v501 = vmul.f32 %v424, %v134
  %v502 = vmul.f32 %v423, %v135
  %v503 = vmul.f32 %v422, %v136
  %v504 = vmul.f32 %v421, %v137
  %v505 = vmul.f32 %v436, %v138
  %v506 = vmul.f32 %v435, %v139
  %v507 = vmul.f32 %v434, %v140
  %v508 = vmul.f32 %v433, %v141
  %v509 = vmul.f32 %v448, %v142
  %v510 = vmul.f32 %v447, %v143
  %v511 = vmul.f32 %v446, %v144
  %v512 = vmul.f32 %v445, %v145
  %v513 = vmul.f32 %v397, %v146
  %v514 = vmul.f32 %v398, %v147
  %v515 = vmul.f32 %v399, %v148
  %v516 = vmul.f32 %v400, %v149
  %v517 = vmul.f32 %v459, %v150
  %v518 = vmul.f32 %v458, %v151
  %v519 = vmul.f32 %v457, %v152
  %v520 = vmul.f32 %v460, %v153
  %v521 = vmul.f32 %v471, %v154
  %v522 = vmul.f32 %v470, %v155
  %v523 = vmul.f32 %v469, %v156
  %v524 = vmul.f32 %v472, %v157
  %v525 = vmul.f32 %v483, %v158
  %v526 = vmul.f32 %v482, %v159
  %v527 = vmul.f32 %v481, %v160
  %v528 = vmul.f32 %v484, %v161
  %v529 = vmul.f32 %v495, %v162
  %v530 = vmul.f32 %v494, %v163
  %v531 = vmul.f32 %v493, %v164
  %v532 = vmul.f32 %v496, %v165
  %v533 = vld [vmem:[%s2] sm:$0xff]
  %v535 = vsel %vm203, %v533, 0
  %537 = vmatprep.subr.mxu0 %v498
  %538 = vmatpush1.msra.mxu0 %v497
  %539 = vmatprep.subr.mxu0 %v502
  %540 = vmatpush1.msra.mxu0 %v501
  %541 = vmatprep.subr.mxu0 %v506
  %542 = vmatpush1.msra.mxu0 %v505
  %543 = vmatprep.subr.mxu0 %v510
  %544 = vmatpush1.msra.mxu0 %v509
  %545 = vmatprep.subr.mxu0 %v514
  %546 = vmatpush1.msra.mxu0 %v513
  %547 = vmatprep.subr.mxu0 %v518
  %548 = vmatpush1.msra.mxu0 %v517
  %549 = vmatprep.subr.mxu0 %v522
  %550 = vmatpush1.msra.mxu0 %v521
  %551 = vmatprep.subr.mxu0 %v526
  %552 = vmatpush1.msra.mxu0 %v525
  %553 = vmatprep.subr.mxu0 %v530
  %554 = vmatpush1.msra.mxu0 %v529
  %555 = vmatprep.subr.mxu0 0.0
  %556 = vmatpush1.msra.mxu0 0.0
  %557 = vmatprep.subr.mxu0 0.0
  %558 = vmatpush1.msra.mxu0 0.0
  %559 = vmatprep.subr.mxu0 0.0
  %560 = vmatpush1.msra.mxu0 0.0
  %561 = vmatprep.subr.mxu0 0.0
  %562 = vmatpush1.msra.mxu0 0.0
  %563 = vmatprep.subr.mxu0 0.0
  %564 = vmatpush1.msra.mxu0 0.0
  %565 = vmatprep.subr.mxu0 0.0
  %566 = vmatpush1.msra.mxu0 0.0
  %567 = vmatprep.subr.mxu0 0.0
  %568 = vmatpush1.msra.mxu0 0.0
  %569 = vmatprep.subr.mxu0 0.0
  %570 = vmatpush1.msra.mxu0 0.0
  %571 = vmatprep.subr.mxu0 0.0
  %572 = vmatpush1.msra.mxu0 0.0
  %573 = vmatprep.subr.mxu0 0.0
  %574 = vmatpush1.msra.mxu0 0.0
  %575 = vmatprep.subr.mxu0 0.0
  %576 = vmatpush1.msra.mxu0 0.0
  %577 = vmatprep.subr.mxu0 0.0
  %578 = vmatpush1.msra.mxu0 0.0
  %579 = vmatprep.subr.mxu0 0.0
  %580 = vmatpush1.msra.mxu0 0.0
  %581 = vmatprep.subr.mxu0 0.0
  %582 = vmatpush1.msra.mxu0 0.0
  %583 = vmatprep.subr.mxu0 0.0
  %584 = vmatpush1.msra.mxu0 0.0
  %585 = vmatprep.subr.mxu0 0.0
  %586 = vmatpush1.msra.mxu0 0.0
  %587 = vmatprep.subr.mxu0 0.0
  %588 = vmatpush1.msra.mxu0 0.0
  %589 = vmatprep.subr.mxu0 0.0
  %590 = vmatpush1.msra.mxu0 0.0
  %591 = vmatprep.subr.mxu0 0.0
  %592 = vmatpush1.msra.mxu0 0.0
  %593 = vmatprep.subr.mxu0 0.0
  %594 = vmatpush1.msra.mxu0 0.0
  %595 = vmatprep.subr.mxu0 0.0
  %596 = vmatpush1.msra.mxu0 0.0
  %597 = vmatprep.subr.mxu0 0.0
  %598 = vmatpush1.msra.mxu0 0.0
  %599 = vmatprep.subr.mxu0 0.0
  %600 = vmatpush1.msra.mxu0 0.0
  %601 = vmatprep.mubr.f32.mxu0 0.0
  %602 = vmatmul.mubr.f32.gmra.mrb[0].mxu0 %v535
  %v603 = vpop.f32.mrb[0].mxu0
  %v604 = vadd.f32 0.0, %v603
  %v605 = vpop.f32.mrb[0].mxu0
  %v606 = vadd.f32 0.0, %v605
  %607 = vdwg.mxu0
  %608 = vmatprep.subr.mxu0 %v500
  %609 = vmatpush1.msra.mxu0 %v499
  %610 = vmatprep.subr.mxu0 %v504
  %611 = vmatpush1.msra.mxu0 %v503
  %612 = vmatprep.subr.mxu0 %v508
  %613 = vmatpush1.msra.mxu0 %v507
  %614 = vmatprep.subr.mxu0 %v512
  %615 = vmatpush1.msra.mxu0 %v511
  %616 = vmatprep.subr.mxu0 %v516
  %617 = vmatpush1.msra.mxu0 %v515
  %618 = vmatprep.subr.mxu0 %v520
  %619 = vmatpush1.msra.mxu0 %v519
  %620 = vmatprep.subr.mxu0 %v524
  %621 = vmatpush1.msra.mxu0 %v523
  %622 = vmatprep.subr.mxu0 %v528
  %623 = vmatpush1.msra.mxu0 %v527
  %624 = vmatprep.subr.mxu0 %v532
  %625 = vmatpush1.msra.mxu0 %v531
  %626 = vmatprep.subr.mxu0 0.0
  %627 = vmatpush1.msra.mxu0 0.0
  %628 = vmatprep.subr.mxu0 0.0
  %629 = vmatpush1.msra.mxu0 0.0
  %630 = vmatprep.subr.mxu0 0.0
  %631 = vmatpush1.msra.mxu0 0.0
  %632 = vmatprep.subr.mxu0 0.0
  %633 = vmatpush1.msra.mxu0 0.0
  %634 = vmatprep.subr.mxu0 0.0
  %635 = vmatpush1.msra.mxu0 0.0
  %636 = vmatprep.subr.mxu0 0.0
  %637 = vmatpush1.msra.mxu0 0.0
  %638 = vmatprep.subr.mxu0 0.0
  %639 = vmatpush1.msra.mxu0 0.0
  %640 = vmatprep.subr.mxu0 0.0
  %641 = vmatpush1.msra.mxu0 0.0
  %642 = vmatprep.subr.mxu0 0.0
  %643 = vmatpush1.msra.mxu0 0.0
  %644 = vmatprep.subr.mxu0 0.0
  %645 = vmatpush1.msra.mxu0 0.0
  %646 = vmatprep.subr.mxu0 0.0
  %647 = vmatpush1.msra.mxu0 0.0
  %648 = vmatprep.subr.mxu0 0.0
  %649 = vmatpush1.msra.mxu0 0.0
  %650 = vmatprep.subr.mxu0 0.0
  %651 = vmatpush1.msra.mxu0 0.0
  %652 = vmatprep.subr.mxu0 0.0
  %653 = vmatpush1.msra.mxu0 0.0
  %654 = vmatprep.subr.mxu0 0.0
  %655 = vmatpush1.msra.mxu0 0.0
  %656 = vmatprep.subr.mxu0 0.0
  %657 = vmatpush1.msra.mxu0 0.0
  %658 = vmatprep.subr.mxu0 0.0
  %659 = vmatpush1.msra.mxu0 0.0
  %660 = vmatprep.subr.mxu0 0.0
  %661 = vmatpush1.msra.mxu0 0.0
  %662 = vmatprep.subr.mxu0 0.0
  %663 = vmatpush1.msra.mxu0 0.0
  %664 = vmatprep.subr.mxu0 0.0
  %665 = vmatpush1.msra.mxu0 0.0
  %666 = vmatprep.subr.mxu0 0.0
  %667 = vmatpush1.msra.mxu0 0.0
  %668 = vmatprep.subr.mxu0 0.0
  %669 = vmatpush1.msra.mxu0 0.0
  %670 = vmatprep.subr.mxu0 0.0
  %671 = vmatpush1.msra.mxu0 0.0
  %672 = vmatprep.mubr.f32.mxu0 0.0
  %673 = vmatmul.mubr.f32.gmra.mrb[0].mxu0 %v535
  %v674 = vpop.f32.mrb[0].mxu0
  %v675 = vadd.f32 0.0, %v674
  %v676 = vpop.f32.mrb[0].mxu0
  %v677 = vadd.f32 0.0, %v676
  %678 = vdwg.mxu0
  %v679 = vadd.f32 %v604, %v606
  %v680 = vadd.f32 %v679, %v675
  %v681 = vadd.f32 %v680, %v677
  %682 = vadd.xlane.f32.xlu0 %v681
  %v683 = vpop.xlane.xlu0 %682
  %v684 = vmul.f32 %v683, 0.001953125
  %v685 = vsub.f32 %v604, %v684
  %v686 = vsub.f32 %v606, %v684
  %v687 = vsub.f32 %v675, %v684
  %v688 = vsub.f32 %v677, %v684
  %v689 = vmul.f32 %v685, %v685
  %v690 = vmul.f32 %v686, %v686
  %v691 = vmul.f32 %v687, %v687
  %v692 = vmul.f32 %v688, %v688
  %v693 = vadd.f32 %v689, %v690
  %v694 = vadd.f32 %v693, %v691
  %v695 = vadd.f32 %v694, %v692
  %696 = vadd.xlane.f32.xlu0 %v695
  %v697 = vpop.xlane.xlu0 %696
  %v698 = vmul.f32 %v697, 0.001953125
  %v699 = vadd.f32 %v698, 1e-05
  %v700 = vrsqrt.pop %v699
  %v701 = vmul.f32 %v369, %v700
  %v702 = vmul.f32 %v684, %v701
  %704 = vrot.lane.b32.xlu0 %v702, 1
  %v705 = vpop.permute.xlu0 %704
  %v707 = vsub.f32 %v369, %v705
  %709 = vset.pattern.permute.xlu0 2
  %710 = vperm.xlu0 %709, %v701
  %v711 = vpop.permute.xlu0 %710
  %v713 = vmul.f32 %v604, %v711
  %v714 = vmul.f32 %v606, %v711
  %v715 = vmul.f32 %v675, %v711
  %v716 = vmul.f32 %v677, %v711
  %718 = vset.pattern.permute.xlu0 3
  %719 = vperm.xlu0 %718, %v707
  %v720 = vpop.permute.xlu0 %719
  %v722 = vadd.f32 %v713, %v720
  %v723 = vadd.f32 %v714, %v720
  %v724 = vadd.f32 %v715, %v720
  %v725 = vadd.f32 %v716, %v720
  %v726 = vadd.f32 %v722, %v20
  %v727 = vadd.f32 %v723, %v21
  %v728 = vadd.f32 %v724, %v22
  %v729 = vadd.f32 %v725, %v23
  %v730 = vmax.f32 %v726, 0.0
  %v731 = vmax.f32 %v727, 0.0
  %v732 = vmax.f32 %v728, 0.0
  %v733 = vmax.f32 %v729, 0.0
  %734 = vst [vmem:[%s5] sm:$0xff] %v730
  %735 = vst [vmem:[%s5 + $0x8] sm:$0xff] %v731
  %736 = vst [vmem:[%s5 + $0x10] sm:$0xff] %v732
  %737 = vst [vmem:[%s5 + $0x18] sm:$0xff] %v733
  // Predicated region
  $region22: #{basic_block.1} parent=0 // pred_check
    _
  $region23: #{basic_block.1} parent=0 // pred_check_branch
    %739 = sbr.rel (0) target = $region25
  $region24: #{basic_block.1} parent=0 // pred_region
    _
  $region25: #{basic_block.1} parent=0 // pred_fallthru
    _
  // Predicated region
  $region26: #{basic_block.1} parent=0 // pred_check
    _
  $region27: #{basic_block.1} parent=0 // pred_check_branch
    %741 = sbr.rel (0) target = $region29
  $region28: #{basic_block.1} parent=0 // pred_region
    _
  $region29: #{basic_block.1} parent=0 // pred_fallthru
    _

</llo_original>
